<compile_context>
chip_gen: v5e
topology: v5e:2x2
jax: 0.10.0
libtpu: 0.0.40
codegen_flags: <defaults>
</compile_context>

<pallas_src>
import jax
import jax.numpy as jnp
from jax.experimental import pallas as pl
from jax.experimental.pallas import tpu as pltpu


def enc_kernel(x_ref, w1_ref, b1_ref, w2_ref, b2_ref, w3_ref, a1_ref, a2_ref, o_ref):
    # PReLU slopes: scalar reads from SMEM.
    a1 = a1_ref[0]
    a2 = a2_ref[0]

    # Layer 1: Linear(ndim -> 2*hdl) + PReLU   (f32 accumulation, f32 elementwise)
    h = jnp.dot(x_ref[...], w1_ref[...], preferred_element_type=jnp.float32)
    h = h + b1_ref[...]
    h = jnp.where(h > 0, h, a1 * h)

    # Layer 2: Linear(2*hdl -> hdl) + PReLU
    h = jnp.dot(h.astype(w2_ref.dtype), w2_ref[...], preferred_element_type=jnp.float32)
    h = h + b2_ref[...]
    h = jnp.where(h > 0, h, a2 * h)

    # Layer 3: Linear(hdl -> r), no bias
    z = jnp.dot(h.astype(w3_ref.dtype), w3_ref[...], preferred_element_type=jnp.float32)
    o_ref[...] = z.astype(o_ref.dtype)


def _round_up(n, m):
    return ((n + m - 1) // m) * m


def enc_celebset_forward(x, params, *, tile_b=512, compute_dtype=None):
    """Fused forward pass of EncCelebSET.

    x: (B, ndim). tile_b: target batch tile (capped at the aligned batch size).
    compute_dtype: optionally jnp.bfloat16 to halve the x/weight HBM traffic
    (accumulation and elementwise math stay in f32)."""
    w1, b1, a1 = params["w1"], params["b1"], params["a1"]
    w2, b2, a2 = params["w2"], params["b2"], params["a2"]
    w3 = params["w3"]

    B, ndim = x.shape
    h2, hdl = w1.shape[1], w2.shape[1]
    r = w3.shape[1]
    out_dtype = x.dtype

    if compute_dtype is not None:
        x = x.astype(compute_dtype)
        w1 = w1.astype(compute_dtype)
        w2 = w2.astype(compute_dtype)
        w3 = w3.astype(compute_dtype)
    # Biases and PReLU slopes always stay f32 (post-MXU math is f32 on all chips).
    b1 = b1.astype(jnp.float32)
    b2 = b2.astype(jnp.float32)
    a1 = a1.reshape((1,)).astype(jnp.float32)
    a2 = a2.reshape((1,)).astype(jnp.float32)

    # Effective batch tile: big enough to fill the MXU M-dim / amortize per-step overhead,
    # but never larger than the 8-row-aligned batch (tiny B => single grid step).
    tb = max(8, min(tile_b, _round_up(B, 8)))
    Bp = _round_up(B, tb)
    if Bp != B:
        x = jnp.pad(x, ((0, Bp - B), (0, 0)))
    grid = (Bp // tb,)

    # Invariant operands: constant block index => DMA'd once, resident across the grid.
    rep = lambda shape: pl.BlockSpec(shape, lambda i: (0, 0))
    # Scalar PReLU slopes: whole (tiny) array in SMEM, read on the scalar path.
    smem_scalar = pl.BlockSpec(memory_space=pltpu.MemorySpace.SMEM)

    out = pl.pallas_call(
        enc_kernel,
        out_shape=jax.ShapeDtypeStruct((Bp, r), out_dtype),
        grid_spec=pltpu.PrefetchScalarGridSpec(
            num_scalar_prefetch=0,
            grid=grid,
            in_specs=[
                pl.BlockSpec((tb, ndim), lambda i: (i, 0)),  # x tile (batch-tiled)
                rep((ndim, h2)),   # w1
                rep((1, h2)),      # b1
                rep((h2, hdl)),    # w2
                rep((1, hdl)),     # b2
                rep((hdl, r)),     # w3
                smem_scalar,       # a1 (PReLU slope, SMEM)
                smem_scalar,       # a2 (PReLU slope, SMEM)
            ],
            out_specs=pl.BlockSpec((tb, r), lambda i: (i, 0)),
        ),
        compiler_params=pltpu.CompilerParams(
            dimension_semantics=("parallel",),
            # Safe on every generation (v5e default is 16 MiB; v7x physical is 64 MiB);
            # leaves headroom for large tile_b without risking over-subscription.
            vmem_limit_bytes=32 * 1024 * 1024,
        ),
    )(x, w1, b1, w2, b2, w3, a1, a2)

    return out[:B]


def init_params(key, ndim, r, hdl, dtype=jnp.float32):
    """Deterministic synthetic init matching the PyTorch module's parameter shapes.

    PyTorch stores Linear weight as (out, in); we store the transpose (in, out)."""
    k1, k2, k3, k4, k5 = jax.random.split(key, 5)
    h2 = 2 * hdl
    scale = 0.05
    return {
        "w1": scale * jax.random.normal(k1, (ndim, h2), dtype),
        "b1": scale * jax.random.normal(k2, (1, h2), dtype),
        "a1": jnp.full((1, 1), 0.25, dtype),           # nn.PReLU default init
        "w2": scale * jax.random.normal(k3, (h2, hdl), dtype),
        "b2": scale * jax.random.normal(k4, (1, hdl), dtype),
        "a2": jnp.full((1, 1), 0.25, dtype),
        "w3": scale * jax.random.normal(k5, (hdl, r), dtype),
    }


def reference_forward(x, params):
    """Plain-JAX reference of the same math for a correctness check."""
    prelu = lambda v, a: jnp.where(v > 0, v, a * v)
    h = x @ params["w1"] + params["b1"]
    h = prelu(h, params["a1"][0, 0])
    h = h @ params["w2"] + params["b2"]
    h = prelu(h, params["a2"][0, 0])
    return h @ params["w3"]


if __name__ == "__main__":
    # Small shapes consistent with the module: ndim=32 features, hdl=32 hidden, r=8 codes.
    B, ndim, hdl, r = 16, 32, 32, 8

    key = jax.random.PRNGKey(0)
    kx, kp = jax.random.split(key)
    x = jax.random.normal(kx, (B, ndim), jnp.float32)
    params = init_params(kp, ndim, r, hdl)
    z_ref = reference_forward(x, params)

    # 1) f32 path (tiny batch => single grid step; tile_b is capped automatically).
    z = jax.block_until_ready(enc_celebset_forward(x, params))
    assert z.shape == (B, r)
    assert jnp.allclose(z, z_ref, atol=1e-5, rtol=1e-5), "f32 mismatch vs reference"

    # 2) Ragged batch (exercises the cdiv/padding path instead of an assert).
    Br = 13
    xr = x[:Br]
    zr = jax.block_until_ready(enc_celebset_forward(xr, params))
    assert zr.shape == (Br, r)
    assert jnp.allclose(zr, z_ref[:Br], atol=1e-5, rtol=1e-5), "ragged-batch mismatch"

    # 3) bf16 input/weight path (HBM-bound large-B option for v5e/v6e); loose tolerance.
    zb = jax.block_until_ready(
        enc_celebset_forward(x, params, compute_dtype=jnp.bfloat16))
    assert zb.shape == (B, r)
    assert jnp.allclose(zb, z_ref, atol=2e-2, rtol=1e-1), "bf16 path mismatch"

    print("KERNEL_OK")
</pallas_src>

<mosaic_0001>
module attributes {stable_mosaic.version = 11 : i64} {
  func.func @enc_kernel(%arg0: i32, %arg1: memref<16x32xf32, #tpu.memory_space<vmem>>, %arg2: memref<32x64xf32, #tpu.memory_space<vmem>>, %arg3: memref<1x64xf32, #tpu.memory_space<vmem>>, %arg4: memref<64x32xf32, #tpu.memory_space<vmem>>, %arg5: memref<1x32xf32, #tpu.memory_space<vmem>>, %arg6: memref<32x8xf32, #tpu.memory_space<vmem>>, %arg7: memref<1xf32, #tpu.memory_space<smem>>, %arg8: memref<1xf32, #tpu.memory_space<smem>>, %arg9: memref<16x8xf32, #tpu.memory_space<vmem>>) attributes {dimension_semantics = [#tpu.dimension_semantics<parallel>], iteration_bounds = array<i64: 1>, scalar_prefetch = 0 : i64, scratch_operands = 0 : i64, tpu.core_type = #tpu.core_type<tc>, window_params = [{transform_indices = @transform_0, window_bounds = array<i64: 16, 32>}, {pipeline_mode = #tpu.pipeline_mode<synchronous>, transform_indices = @transform_1, window_bounds = array<i64: 32, 64>}, {pipeline_mode = #tpu.pipeline_mode<synchronous>, transform_indices = @transform_2, window_bounds = array<i64: 1, 64>}, {pipeline_mode = #tpu.pipeline_mode<synchronous>, transform_indices = @transform_3, window_bounds = array<i64: 64, 32>}, {pipeline_mode = #tpu.pipeline_mode<synchronous>, transform_indices = @transform_4, window_bounds = array<i64: 1, 32>}, {pipeline_mode = #tpu.pipeline_mode<synchronous>, transform_indices = @transform_5, window_bounds = array<i64: 32, 8>}, {transform_indices = @transform_6, window_bounds = array<i64: 1>}, {transform_indices = @transform_7, window_bounds = array<i64: 1>}, {transform_indices = @transform_8, window_bounds = array<i64: 16, 8>}]} {
    %c0 = arith.constant 0 : index
    %0 = memref.load %arg7[%c0] : memref<1xf32, #tpu.memory_space<smem>>
    %c0_0 = arith.constant 0 : index
    %1 = memref.load %arg8[%c0_0] : memref<1xf32, #tpu.memory_space<smem>>
    %c0_1 = arith.constant 0 : index
    %c0_2 = arith.constant 0 : index
    %2 = vector.load %arg1[%c0_1, %c0_2] : memref<16x32xf32, #tpu.memory_space<vmem>>, vector<16x32xf32>
    %c0_3 = arith.constant 0 : index
    %c0_4 = arith.constant 0 : index
    %3 = vector.load %arg2[%c0_3, %c0_4] : memref<32x64xf32, #tpu.memory_space<vmem>>, vector<32x64xf32>
    %cst = arith.constant dense<0.000000e+00> : vector<16x64xf32>
    %4 = tpu.matmul %2, %3, %cst {dimension_numbers = #tpu.dot_dimension_numbers<[1], [0], [0], [1], [0, 0, 1, 1], [], []>} : vector<16x32xf32>, vector<32x64xf32>, vector<16x64xf32> -> vector<16x64xf32>
    %c0_5 = arith.constant 0 : index
    %c0_6 = arith.constant 0 : index
    %5 = vector.load %arg3[%c0_5, %c0_6] : memref<1x64xf32, #tpu.memory_space<vmem>>, vector<1x64xf32>
    %6 = vector.broadcast %5 : vector<1x64xf32> to vector<16x64xf32>
    %7 = arith.addf %4, %6 : vector<16x64xf32>
    %cst_7 = arith.constant 0.000000e+00 : f32
    %8 = vector.broadcast %cst_7 : f32 to vector<16x64xf32>
    %9 = arith.cmpf ogt, %7, %8 : vector<16x64xf32>
    %10 = vector.broadcast %0 : f32 to vector<16x64xf32>
    %11 = arith.mulf %10, %7 : vector<16x64xf32>
    %12 = arith.select %9, %7, %11 : vector<16x64xi1>, vector<16x64xf32>
    %c0_8 = arith.constant 0 : index
    %c0_9 = arith.constant 0 : index
    %13 = vector.load %arg4[%c0_8, %c0_9] : memref<64x32xf32, #tpu.memory_space<vmem>>, vector<64x32xf32>
    %cst_10 = arith.constant dense<0.000000e+00> : vector<16x32xf32>
    %14 = tpu.matmul %12, %13, %cst_10 {dimension_numbers = #tpu.dot_dimension_numbers<[1], [0], [0], [1], [0, 0, 1, 1], [], []>} : vector<16x64xf32>, vector<64x32xf32>, vector<16x32xf32> -> vector<16x32xf32>
    %c0_11 = arith.constant 0 : index
    %c0_12 = arith.constant 0 : index
    %15 = vector.load %arg5[%c0_11, %c0_12] : memref<1x32xf32, #tpu.memory_space<vmem>>, vector<1x32xf32>
    %16 = vector.broadcast %15 : vector<1x32xf32> to vector<16x32xf32>
    %17 = arith.addf %14, %16 : vector<16x32xf32>
    %cst_13 = arith.constant 0.000000e+00 : f32
    %18 = vector.broadcast %cst_13 : f32 to vector<16x32xf32>
    %19 = arith.cmpf ogt, %17, %18 : vector<16x32xf32>
    %20 = vector.broadcast %1 : f32 to vector<16x32xf32>
    %21 = arith.mulf %20, %17 : vector<16x32xf32>
    %22 = arith.select %19, %17, %21 : vector<16x32xi1>, vector<16x32xf32>
    %c0_14 = arith.constant 0 : index
    %c0_15 = arith.constant 0 : index
    %23 = vector.load %arg6[%c0_14, %c0_15] : memref<32x8xf32, #tpu.memory_space<vmem>>, vector<32x8xf32>
    %cst_16 = arith.constant dense<0.000000e+00> : vector<16x8xf32>
    %24 = tpu.matmul %22, %23, %cst_16 {dimension_numbers = #tpu.dot_dimension_numbers<[1], [0], [0], [1], [0, 0, 1, 1], [], []>} : vector<16x32xf32>, vector<32x8xf32>, vector<16x8xf32> -> vector<16x8xf32>
    %c0_17 = arith.constant 0 : index
    %c0_18 = arith.constant 0 : index
    %25 = vector.load %arg9[%c0_17, %c0_18] : memref<16x8xf32, #tpu.memory_space<vmem>>, vector<16x8xf32>
    tpu.vector_store %arg9[%c0_17, %c0_18], %24 {strides = array<i32>} : memref<16x8xf32, #tpu.memory_space<vmem>>, vector<16x8xf32>,
    return
  }
  func.func @transform_0(%arg0: i32) -> (i32, i32) {
    %c0_i32 = arith.constant 0 : i32
    %c0_i32_0 = arith.constant 0 : i32
    return %arg0, %c0_i32 : i32, i32
  }
  func.func @transform_1(%arg0: i32) -> (i32, i32) {
    %c0_i32 = arith.constant 0 : i32
    %c0_i32_0 = arith.constant 0 : i32
    %c0_i32_1 = arith.constant 0 : i32
    return %c0_i32, %c0_i32_0 : i32, i32
  }
  func.func @transform_2(%arg0: i32) -> (i32, i32) {
    %c0_i32 = arith.constant 0 : i32
    %c0_i32_0 = arith.constant 0 : i32
    %c0_i32_1 = arith.constant 0 : i32
    return %c0_i32, %c0_i32_0 : i32, i32
  }
  func.func @transform_3(%arg0: i32) -> (i32, i32) {
    %c0_i32 = arith.constant 0 : i32
    %c0_i32_0 = arith.constant 0 : i32
    %c0_i32_1 = arith.constant 0 : i32
    return %c0_i32, %c0_i32_0 : i32, i32
  }
  func.func @transform_4(%arg0: i32) -> (i32, i32) {
    %c0_i32 = arith.constant 0 : i32
    %c0_i32_0 = arith.constant 0 : i32
    %c0_i32_1 = arith.constant 0 : i32
    return %c0_i32, %c0_i32_0 : i32, i32
  }
  func.func @transform_5(%arg0: i32) -> (i32, i32) {
    %c0_i32 = arith.constant 0 : i32
    %c0_i32_0 = arith.constant 0 : i32
    %c0_i32_1 = arith.constant 0 : i32
    return %c0_i32, %c0_i32_0 : i32, i32
  }
  func.func @transform_6(%arg0: i32) -> i32 {
    %c0_i32 = arith.constant 0 : i32
    %c0_i32_0 = arith.constant 0 : i32
    return %c0_i32 : i32
  }
  func.func @transform_7(%arg0: i32) -> i32 {
    %c0_i32 = arith.constant 0 : i32
    %c0_i32_0 = arith.constant 0 : i32
    return %c0_i32 : i32
  }
  func.func @transform_8(%arg0: i32) -> (i32, i32) {
    %c0_i32 = arith.constant 0 : i32
    %c0_i32_0 = arith.constant 0 : i32
    return %arg0, %c0_i32 : i32, i32
  }
}

</mosaic_0001>

<llo_original>
// kernel: tpu_custom_call.1
$region0: #{tpu_custom_call.1}
  #allocation0 [shape = 'u32[]', space=smem, size = 0x4, offset = 0x4, fixed_abs, tag = 'smem constant byte address 0x4 - core index']
  #allocation1 [shape = 'u32[72,128]{1,0:T(1,128)}', space=vmem, size = 0x9000, scoped, tag = 'internal scratch']
  #allocation2 [shape = 'f32[1]{0:T(128)S(6)}', space=smem, size = 0x200, scoped, tag = 'scoped memory for tpu_custom_call.1']
  #allocation3 [shape = 'f32[1]{0:T(128)S(6)}', space=smem, size = 0x200, scoped, tag = 'scoped memory for tpu_custom_call.1']
  %s0 = inlined_call_operand.vmem [shape: f32[16,32], index: 0, kind: input, shape index: {}]
  %s1 = inlined_call_operand.vmem [shape: f32[32,64], index: 1, kind: input, shape index: {}]
  %s2 = inlined_call_operand.vmem [shape: f32[1,64], index: 2, kind: input, shape index: {}]
  %s3 = inlined_call_operand.vmem [shape: f32[64,32], index: 3, kind: input, shape index: {}]
  %s4 = inlined_call_operand.vmem [shape: f32[1,32], index: 4, kind: input, shape index: {}]
  %s5 = inlined_call_operand.vmem [shape: f32[32,8], index: 5, kind: input, shape index: {}]
  %s6 = inlined_call_operand.<no memory space> [shape: f32[1], index: 6, kind: input, shape index: {}]
  %s7 = inlined_call_operand.<no memory space> [shape: f32[1], index: 7, kind: input, shape index: {}]
  %s8 = inlined_call_operand.vmem [shape: f32[16,8], index: 8, kind: output, shape index: {}]
  %s9 = sld [smem:[#allocation0]]
  $region42: #{tpu_custom_call.1} parent=0
    _
  %s11 = ssub.s32 1, %s9
  %s12 = scalar_select 0, %s11, %s9
  %13 = sst [smem:[#allocation2]] %s6
  %14 = sst [smem:[#allocation3]] %s7
  // Predicated region
  $region2: #{tpu_custom_call.1} parent=0 // pred_check
    _
  $region3: #{tpu_custom_call.1} parent=0 // pred_check_branch
    %16 = sbr.rel (0) target = $region5
  $region4: #{tpu_custom_call.1} parent=0 // pred_region
    _
  $region5: #{tpu_custom_call.1} parent=0 // pred_fallthru
    _
  // Predicated region
  $region6: #{tpu_custom_call.1} parent=0 // pred_check
    _
  $region7: #{tpu_custom_call.1} parent=0 // pred_check_branch
    %18 = sbr.rel (0) target = $region9
  $region8: #{tpu_custom_call.1} parent=0 // pred_region
    _
  $region9: #{tpu_custom_call.1} parent=0 // pred_fallthru
    _
  // Predicated region
  $region10: #{tpu_custom_call.1} parent=0 // pred_check
    _
  $region11: #{tpu_custom_call.1} parent=0 // pred_check_branch
    %20 = sbr.rel (0) target = $region13
  $region12: #{tpu_custom_call.1} parent=0 // pred_region
    _
  $region13: #{tpu_custom_call.1} parent=0 // pred_fallthru
    _
  // Predicated region
  $region14: #{tpu_custom_call.1} parent=0 // pred_check
    _
  $region15: #{tpu_custom_call.1} parent=0 // pred_check_branch
    %22 = sbr.rel (0) target = $region17
  $region16: #{tpu_custom_call.1} parent=0 // pred_region
    _
  $region17: #{tpu_custom_call.1} parent=0 // pred_fallthru
    _
  // Predicated region
  $region18: #{tpu_custom_call.1} parent=0 // pred_check
    _
  $region19: #{tpu_custom_call.1} parent=0 // pred_check_branch
    %24 = sbr.rel (0) target = $region21
  $region20: #{tpu_custom_call.1} parent=0 // pred_region
    _
  $region21: #{tpu_custom_call.1} parent=0 // pred_fallthru
    _
  // Predicated region
  $region22: #{tpu_custom_call.1} parent=0 // pred_check
    _
  $region23: #{tpu_custom_call.1} parent=0 // pred_check_branch
    %26 = sbr.rel (0) target = $region25
  $region24: #{tpu_custom_call.1} parent=0 // pred_region
    _
  $region25: #{tpu_custom_call.1} parent=0 // pred_fallthru
    _
  // Predicated region
  $region26: #{tpu_custom_call.1} parent=0 // pred_check
    _
  $region27: #{tpu_custom_call.1} parent=0 // pred_check_branch
    %28 = sbr.rel (0) target = $region29
  $region28: #{tpu_custom_call.1} parent=0 // pred_region
    _
  $region29: #{tpu_custom_call.1} parent=0 // pred_fallthru
    _
  // Predicated region
  $region30: #{tpu_custom_call.1} parent=0 // pred_check
    _
  $region31: #{tpu_custom_call.1} parent=0 // pred_check_branch
    %30 = sbr.rel (0) target = $region33
  $region32: #{tpu_custom_call.1} parent=0 // pred_region
    _
  $region33: #{tpu_custom_call.1} parent=0 // pred_fallthru
    _
  %s31 = sld [smem:[#allocation2]]
  %s32 = sld [smem:[#allocation3]]
  %v33 = vld [vmem:[%s0] sm:$0xff]
  %v34 = vld [vmem:[%s0 + $0x8] sm:$0xff]
  %v35 = vld [vmem:[%s1] sm:$0xff]
  %v36 = vld [vmem:[%s1 + $0x8] sm:$0xff]
  %v37 = vld [vmem:[%s1 + $0x10] sm:$0xff]
  %v38 = vld [vmem:[%s1 + $0x18] sm:$0xff]
  %v39 = vld [vmem:[%s2] sm:$0x1]
  %v41 = vperm.slane %v39, 0
  %vm43 = vcmask 261120
  %v45 = vsel %vm43, %v33, 0
  %v48 = vsel %vm43, %v34, 0
  %50 = vmatpush.msra.mxu0 0.0
  %51 = vmatpush.msra.mxu0 0.0
  %52 = vmatpush.msra.mxu0 0.0
  %53 = vmatpush.msra.mxu0 0.0
  %54 = vmatpush.msra.mxu0 0.0
  %55 = vmatpush.msra.mxu0 0.0
  %56 = vmatpush.msra.mxu0 0.0
  %57 = vmatpush.msra.mxu0 0.0
  %58 = vmatpush.msra.mxu0 0.0
  %59 = vmatpush.msra.mxu0 0.0
  %60 = vmatpush.msra.mxu0 0.0
  %61 = vmatpush.msra.mxu0 0.0
  %62 = vmatpush.msra.mxu0 %v38
  %63 = vmatpush.msra.mxu0 %v37
  %64 = vmatpush.msra.mxu0 %v36
  %65 = vmatpush.msra.mxu0 %v35
  %66 = vmatmul.f32.gmra.mxu0 %v45
  %v67 = vpop.f32.mrf.mxu0
  %v68 = vadd.f32 %v41, %v67
  %69 = vmatmul.f32.gmra.mxu0 %v48
  %v70 = vpop.f32.mrf.mxu0
  %v71 = vadd.f32 %v41, %v70
  %72 = vdwg.mxu0
  %vm73 = vcmp.gt.f32.partialorder %v68, 0.0
  %vm74 = vcmp.gt.f32.partialorder %v71, 0.0
  %v75 = vstv %s31
  %v76 = vmul.f32 %v75, %v68
  %v77 = vmul.f32 %v75, %v71
  %v78 = vsel %vm73, %v68, %v76
  %v79 = vsel %vm74, %v71, %v77
  %v80 = vld [vmem:[%s3] sm:$0xff]
  %v81 = vld [vmem:[%s3 + $0x8] sm:$0xff]
  %v82 = vld [vmem:[%s3 + $0x10] sm:$0xff]
  %v83 = vld [vmem:[%s3 + $0x18] sm:$0xff]
  %v84 = vld [vmem:[%s3 + $0x20] sm:$0xff]
  %v85 = vld [vmem:[%s3 + $0x28] sm:$0xff]
  %v86 = vld [vmem:[%s3 + $0x30] sm:$0xff]
  %v87 = vld [vmem:[%s3 + $0x38] sm:$0xff]
  %v88 = vld [vmem:[%s4] sm:$0x1]
  %v90 = vperm.slane %v88, 0
  %vm92 = vcmask 523264
  %v94 = vsel %vm92, %v78, 0
  %v97 = vsel %vm92, %v79, 0
  %99 = vmatpush.msra.mxu0 0.0
  %100 = vmatpush.msra.mxu0 0.0
  %101 = vmatpush.msra.mxu0 0.0
  %102 = vmatpush.msra.mxu0 0.0
  %103 = vmatpush.msra.mxu0 0.0
  %104 = vmatpush.msra.mxu0 0.0
  %105 = vmatpush.msra.mxu0 0.0
  %106 = vmatpush.msra.mxu0 0.0
  %107 = vmatpush.msra.mxu0 %v87
  %108 = vmatpush.msra.mxu0 %v86
  %109 = vmatpush.msra.mxu0 %v85
  %110 = vmatpush.msra.mxu0 %v84
  %111 = vmatpush.msra.mxu0 %v83
  %112 = vmatpush.msra.mxu0 %v82
  %113 = vmatpush.msra.mxu0 %v81
  %114 = vmatpush.msra.mxu0 %v80
  %115 = vmatmul.f32.gmra.mxu0 %v94
  %v116 = vpop.f32.mrf.mxu0
  %v117 = vadd.f32 %v90, %v116
  %118 = vmatmul.f32.gmra.mxu0 %v97
  %v119 = vpop.f32.mrf.mxu0
  %v120 = vadd.f32 %v90, %v119
  %121 = vdwg.mxu0
  %vm122 = vcmp.gt.f32.partialorder %v117, 0.0
  %vm123 = vcmp.gt.f32.partialorder %v120, 0.0
  %v124 = vstv %s32
  %v125 = vmul.f32 %v124, %v117
  %v126 = vmul.f32 %v124, %v120
  %v127 = vsel %vm122, %v117, %v125
  %v128 = vsel %vm123, %v120, %v126
  %v129 = vld [vmem:[%s5] sm:$0xff]
  %v130 = vld [vmem:[%s5 + $0x8] sm:$0xff]
  %v131 = vld [vmem:[%s5 + $0x10] sm:$0xff]
  %v132 = vld [vmem:[%s5 + $0x18] sm:$0xff]
  %v134 = vsel %vm43, %v127, 0
  %v137 = vsel %vm43, %v128, 0
  %139 = vmatpush.msra.mxu0 0.0
  %140 = vmatpush.msra.mxu0 0.0
  %141 = vmatpush.msra.mxu0 0.0
  %142 = vmatpush.msra.mxu0 0.0
  %143 = vmatpush.msra.mxu0 0.0
  %144 = vmatpush.msra.mxu0 0.0
  %145 = vmatpush.msra.mxu0 0.0
  %146 = vmatpush.msra.mxu0 0.0
  %147 = vmatpush.msra.mxu0 0.0
  %148 = vmatpush.msra.mxu0 0.0
  %149 = vmatpush.msra.mxu0 0.0
  %150 = vmatpush.msra.mxu0 0.0
  %151 = vmatpush.msra.mxu0 %v132
  %152 = vmatpush.msra.mxu0 %v131
  %153 = vmatpush.msra.mxu0 %v130
  %154 = vmatpush.msra.mxu0 %v129
  %155 = vmatmul.f32.gmra.mxu0 %v134
  %v156 = vpop.f32.mrf.mxu0
  %v157 = vadd.f32 0.0, %v156
  %158 = vmatmul.f32.gmra.mxu0 %v137
  %v159 = vpop.f32.mrf.mxu0
  %v160 = vadd.f32 0.0, %v159
  %161 = vdwg.mxu0
  %vm162 = vcmask 64512
  %163 = vst.msk [vmem:[%s8] sm:$0xff] %vm162, %v157
  %164 = vst.msk [vmem:[%s8 + $0x8] sm:$0xff] %vm162, %v160
  // Predicated region
  $region34: #{tpu_custom_call.1} parent=0 // pred_check
    _
  $region35: #{tpu_custom_call.1} parent=0 // pred_check_branch
    %166 = sbr.rel (0) target = $region37
  $region36: #{tpu_custom_call.1} parent=0 // pred_region
    _
  $region37: #{tpu_custom_call.1} parent=0 // pred_fallthru
    _
  // Predicated region
  $region38: #{tpu_custom_call.1} parent=0 // pred_check
    _
  $region39: #{tpu_custom_call.1} parent=0 // pred_check_branch
    %168 = sbr.rel (0) target = $region41
  $region40: #{tpu_custom_call.1} parent=0 // pred_region
    _
  $region41: #{tpu_custom_call.1} parent=0 // pred_fallthru
    _

</llo_original>
